<compile_context>
chip_gen: v6e
topology: v6e:2x2x1
jax: 0.10.0
libtpu: 0.0.40
codegen_flags: <defaults>
</compile_context>

<pallas_src>
import functools

import jax
import jax.numpy as jnp
from jax.experimental import pallas as pl
from jax.experimental.pallas import tpu as pltpu


# ----------------------------------------------------------------------------
# Fused Pallas kernel (transposed layout: channels on sublanes, M on lanes).
#   xT : (Cin,      Mp)       input activations, transposed (Mp = padded M)
#   w0T: (4*Cout0,  Cin)      transposed deconv weight (positions stacked on rows)
#   w1T: (4*Cout1,  4*Cout0)  transposed block-diagonal 1x1-conv weight
#   oT : (4*Cout1,  Mp)       fused output, transposed (lane-dense store)
# ----------------------------------------------------------------------------
def _fused_decoder_kernel(xT_ref, w0T_ref, w1T_ref, oT_ref):
    x = jnp.maximum(xT_ref[...], 0.0)                        # block-0 LeakyReLU(0)
    y = jnp.dot(w0T_ref[...], x,
                preferred_element_type=jnp.float32)          # deconv matmul (4C0, Mp)
    y = jnp.maximum(y, 0.0)                                  # block-1 LeakyReLU(0)
    z = jnp.dot(w1T_ref[...], y,
                preferred_element_type=jnp.float32)          # 1x1-conv matmul (4C1, Mp)
    oT_ref[...] = z.astype(oT_ref.dtype)


def _fused_decoder_call(xT, w0T, w1T):
    cin, mp = xT.shape
    n0 = w0T.shape[0]        # 4 * Cout0
    n1 = w1T.shape[0]        # 4 * Cout1
    return pl.pallas_call(
        _fused_decoder_kernel,
        out_shape=jax.ShapeDtypeStruct((n1, mp), jnp.float32),
        grid_spec=pltpu.PrefetchScalarGridSpec(
            num_scalar_prefetch=0,
            grid=(1,),                                        # single step: no per-step overhead
            in_specs=[
                pl.BlockSpec((cin, mp), lambda i: (0, 0)),    # full arrays resident in VMEM
                pl.BlockSpec((n0, cin), lambda i: (0, 0)),
                pl.BlockSpec((n1, n0), lambda i: (0, 0)),
            ],
            out_specs=pl.BlockSpec((n1, mp), lambda i: (0, 0)),
        ),
        compiler_params=pltpu.CompilerParams(
            dimension_semantics=("arbitrary",)),
    )(xT, w0T, w1T)


# ----------------------------------------------------------------------------
# Decoder forward (dense equivalent, unet=False, return_blocks=False).
# x_nhwc: (N, H, W, Cin)  <->  PyTorch/scn NCHW (N, Cin, H, W)
# w_deconv: (2, 2, Cin, Cout0)   (ky, kx, cin, cout) -- FullConvolution weight
# w_1x1:    (Cout0, Cout1)       -- SubmanifoldConvolution filter-1 weight
# returns:  (N, 2H, 2W, Cout1)
# ----------------------------------------------------------------------------
@functools.partial(jax.jit, static_argnums=())
def decoder_forward(x_nhwc, w_deconv, w_1x1):
    n, h, w_, cin = x_nhwc.shape
    cout0 = w_deconv.shape[-1]
    cout1 = w_1x1.shape[-1]
    m = n * h * w_

    # Transposed, lane-dense activation slab: (Cin, M), M padded to a lane
    # multiple (128) so the in/out DMAs and stores are unmasked. For the demo
    # shape M == 128 exactly, so this is a no-op.
    mp = max(128, -(-m // 128) * 128)
    xT = x_nhwc.reshape(m, cin).T
    if mp != m:
        xT = jnp.pad(xT, ((0, 0), (0, mp - m)))

    # Deconv weight flattened over the 4 kernel positions (k = 2*ky + kx),
    # column index = k*Cout0 + co; then transposed: (4*Cout0, Cin).
    w0 = jnp.transpose(w_deconv.reshape(4, cin, cout0), (1, 0, 2)).reshape(cin, 4 * cout0)
    w0T = w0.T

    # Block-diagonal 1x1-conv weight (applies the conv per kernel position,
    # i.e. before the spatial interleave), transposed: (4*Cout1, 4*Cout0).
    w1_blk = jnp.kron(jnp.eye(4, dtype=w_1x1.dtype), w_1x1)  # (4*Cout0, 4*Cout1)
    w1T = w1_blk.T

    zT = _fused_decoder_call(xT, w0T, w1T)                    # (4*Cout1, Mp)
    zT = zT[:, :m]                                            # drop lane padding

    # Deferred spatial interleave: zT[k*Cout1 + c, (n*H+y)*W + x]
    #   -> out[n, 2y+ky, 2x+kx, c], with k = 2*ky + kx.
    out = zT.reshape(2, 2, cout1, n, h, w_)
    out = jnp.transpose(out, (3, 4, 0, 5, 1, 2)).reshape(n, 2 * h, 2 * w_, cout1)
    # TODO(synk): scn.Sparsify has no dense equivalent; identity here.
    return out


# ----------------------------------------------------------------------------
# Independent pure-JAX reference (naive sequential blocks, no fusion / no
# block-diag / no transposed layout) for a correctness check.
# ----------------------------------------------------------------------------
def _ref_forward(x_nhwc, w_deconv, w_1x1):
    n, h, w_, cin = x_nhwc.shape
    cout0 = w_deconv.shape[-1]
    # block 0: ReLU + transposed conv (kernel 2, stride 2, no overlap, no bias)
    xr = jnp.maximum(x_nhwc, 0.0)
    y = jnp.einsum('nyxc,ijcd->nyixjd', xr, w_deconv)         # (n, h, ky, w, kx, cout0)
    y = y.reshape(n, 2 * h, 2 * w_, cout0)
    # block 1: ReLU + 1x1 conv (no bias)
    z = jnp.maximum(y, 0.0) @ w_1x1
    return z


# ----------------------------------------------------------------------------
if __name__ == "__main__":
    # Decoder(dimension=2, n_layers=[(8, 16), (4, 8, False)], unet=False)
    #   block 0: n_in=16 -> n_out=8, FullConvolution filter=2 stride=2
    #   block 1: n_in=8  -> n_out=4, SubmanifoldConvolution filter=1
    key = jax.random.PRNGKey(0)
    k_x, k_w0, k_w1 = jax.random.split(key, 3)

    # Input: PyTorch NCHW (2, 16, 8, 8)  <->  our NHWC layout (2, 8, 8, 16).
    x = jax.random.normal(k_x, (2, 8, 8, 16), dtype=jnp.float32)

    # Deterministic synthetic weights (shapes dictated by the module __init__).
    # NOTE: (ky, kx, cin, cout) ordering is our convention; scn's on-disk weight
    # layout may differ and would need a one-time permutation when porting real
    # checkpoints.
    w_deconv = 0.1 * jax.random.normal(k_w0, (2, 2, 16, 8), dtype=jnp.float32)
    w_1x1 = 0.1 * jax.random.normal(k_w1, (8, 4), dtype=jnp.float32)

    out = decoder_forward(x, w_deconv, w_1x1)
    out = jax.block_until_ready(out)
    assert out.shape == (2, 16, 16, 4), out.shape

    ref = jax.block_until_ready(_ref_forward(x, w_deconv, w_1x1))
    err = float(jnp.max(jnp.abs(out - ref)))
    assert jnp.allclose(out, ref, atol=1e-4, rtol=1e-4), err

    print("KERNEL_OK")
</pallas_src>

<mosaic_0001>
module attributes {stable_mosaic.version = 11 : i64} {
  func.func @_fused_decoder_kernel(%arg0: i32, %arg1: memref<16x128xf32, #tpu.memory_space<vmem>>, %arg2: memref<32x16xf32, #tpu.memory_space<vmem>>, %arg3: memref<16x32xf32, #tpu.memory_space<vmem>>, %arg4: memref<16x128xf32, #tpu.memory_space<vmem>>) attributes {dimension_semantics = [#tpu.dimension_semantics<arbitrary>], iteration_bounds = array<i64: 1>, scalar_prefetch = 0 : i64, scratch_operands = 0 : i64, tpu.core_type = #tpu.core_type<tc>, window_params = [{pipeline_mode = #tpu.pipeline_mode<synchronous>, transform_indices = @transform_0, window_bounds = array<i64: 16, 128>}, {pipeline_mode = #tpu.pipeline_mode<synchronous>, transform_indices = @transform_1, window_bounds = array<i64: 32, 16>}, {pipeline_mode = #tpu.pipeline_mode<synchronous>, transform_indices = @transform_2, window_bounds = array<i64: 16, 32>}, {pipeline_mode = #tpu.pipeline_mode<synchronous>, transform_indices = @transform_3, window_bounds = array<i64: 16, 128>}]} {
    %c0 = arith.constant 0 : index
    %c0_0 = arith.constant 0 : index
    %0 = vector.load %arg1[%c0, %c0_0] : memref<16x128xf32, #tpu.memory_space<vmem>>, vector<16x128xf32>
    %cst = arith.constant 0.000000e+00 : f32
    %1 = vector.broadcast %cst : f32 to vector<16x128xf32>
    %2 = arith.maximumf %0, %1 : vector<16x128xf32>
    %c0_1 = arith.constant 0 : index
    %c0_2 = arith.constant 0 : index
    %3 = vector.load %arg2[%c0_1, %c0_2] : memref<32x16xf32, #tpu.memory_space<vmem>>, vector<32x16xf32>
    %cst_3 = arith.constant dense<0.000000e+00> : vector<32x128xf32>
    %4 = tpu.matmul %3, %2, %cst_3 {dimension_numbers = #tpu.dot_dimension_numbers<[1], [0], [0], [1], [0, 0, 1, 1], [], []>} : vector<32x16xf32>, vector<16x128xf32>, vector<32x128xf32> -> vector<32x128xf32>
    %cst_4 = arith.constant 0.000000e+00 : f32
    %5 = vector.broadcast %cst_4 : f32 to vector<32x128xf32>
    %6 = arith.maximumf %4, %5 : vector<32x128xf32>
    %c0_5 = arith.constant 0 : index
    %c0_6 = arith.constant 0 : index
    %7 = vector.load %arg3[%c0_5, %c0_6] : memref<16x32xf32, #tpu.memory_space<vmem>>, vector<16x32xf32>
    %cst_7 = arith.constant dense<0.000000e+00> : vector<16x128xf32>
    %8 = tpu.matmul %7, %6, %cst_7 {dimension_numbers = #tpu.dot_dimension_numbers<[1], [0], [0], [1], [0, 0, 1, 1], [], []>} : vector<16x32xf32>, vector<32x128xf32>, vector<16x128xf32> -> vector<16x128xf32>
    %c0_8 = arith.constant 0 : index
    %c0_9 = arith.constant 0 : index
    %9 = vector.load %arg4[%c0_8, %c0_9] : memref<16x128xf32, #tpu.memory_space<vmem>>, vector<16x128xf32>
    tpu.vector_store %arg4[%c0_8, %c0_9], %8 {strides = array<i32>} : memref<16x128xf32, #tpu.memory_space<vmem>>, vector<16x128xf32>,
    return
  }
  func.func @transform_0(%arg0: i32) -> (i32, i32) {
    %c0_i32 = arith.constant 0 : i32
    %c0_i32_0 = arith.constant 0 : i32
    %c0_i32_1 = arith.constant 0 : i32
    return %c0_i32, %c0_i32_0 : i32, i32
  }
  func.func @transform_1(%arg0: i32) -> (i32, i32) {
    %c0_i32 = arith.constant 0 : i32
    %c0_i32_0 = arith.constant 0 : i32
    %c0_i32_1 = arith.constant 0 : i32
    return %c0_i32, %c0_i32_0 : i32, i32
  }
  func.func @transform_2(%arg0: i32) -> (i32, i32) {
    %c0_i32 = arith.constant 0 : i32
    %c0_i32_0 = arith.constant 0 : i32
    %c0_i32_1 = arith.constant 0 : i32
    return %c0_i32, %c0_i32_0 : i32, i32
  }
  func.func @transform_3(%arg0: i32) -> (i32, i32) {
    %c0_i32 = arith.constant 0 : i32
    %c0_i32_0 = arith.constant 0 : i32
    %c0_i32_1 = arith.constant 0 : i32
    return %c0_i32, %c0_i32_0 : i32, i32
  }
}

</mosaic_0001>

<llo_original>
// kernel: decoder_forward.1
$region0: #{decoder_forward.1}
  #allocation0 [shape = 'u32[]', space=smem, size = 0x4, offset = 0x4, fixed_abs, tag = 'smem constant byte address 0x4 - core index']
  #allocation1 [shape = 'u32[144,128]{1,0:T(1,128)}', space=vmem, size = 0x12000, scoped, tag = 'internal scratch']
  %s0 = inlined_call_operand.vmem [shape: f32[16,128], index: 0, kind: input, shape index: {}]
  %s1 = inlined_call_operand.vmem [shape: f32[32,16], index: 1, kind: input, shape index: {}]
  %s2 = inlined_call_operand.vmem [shape: f32[16,32], index: 2, kind: input, shape index: {}]
  %s3 = inlined_call_operand.vmem [shape: f32[16,128], index: 3, kind: output, shape index: {}]
  %s4 = sld [smem:[#allocation0]]
  $region22: #{decoder_forward.1} parent=0
    _
  %s6 = ssub.s32 1, %s4
  %s7 = scalar_select 0, %s6, %s4
  // Predicated region
  $region2: #{decoder_forward.1} parent=0 // pred_check
    _
  $region3: #{decoder_forward.1} parent=0 // pred_check_branch
    %9 = sbr.rel (0) target = $region5
  $region4: #{decoder_forward.1} parent=0 // pred_region
    _
  $region5: #{decoder_forward.1} parent=0 // pred_fallthru
    _
  // Predicated region
  $region6: #{decoder_forward.1} parent=0 // pred_check
    _
  $region7: #{decoder_forward.1} parent=0 // pred_check_branch
    %11 = sbr.rel (0) target = $region9
  $region8: #{decoder_forward.1} parent=0 // pred_region
    _
  $region9: #{decoder_forward.1} parent=0 // pred_fallthru
    _
  // Predicated region
  $region10: #{decoder_forward.1} parent=0 // pred_check
    _
  $region11: #{decoder_forward.1} parent=0 // pred_check_branch
    %13 = sbr.rel (0) target = $region13
  $region12: #{decoder_forward.1} parent=0 // pred_region
    _
  $region13: #{decoder_forward.1} parent=0 // pred_fallthru
    _
  %v14 = vld [vmem:[%s0] sm:$0xff]
  %v15 = vld [vmem:[%s0 + $0x8] sm:$0xff]
  %v16 = vmax.f32 %v14, 0.0
  %v17 = vmax.f32 %v15, 0.0
  %v18 = vld [vmem:[%s1] sm:$0xff]
  %v19 = vld [vmem:[%s1 + $0x8] sm:$0xff]
  %v20 = vld [vmem:[%s1 + $0x10] sm:$0xff]
  %v21 = vld [vmem:[%s1 + $0x18] sm:$0xff]
  %vm22 = vcmask 130048
  %v24 = vsel %vm22, %v18, 0
  %v27 = vsel %vm22, %v19, 0
  %v30 = vsel %vm22, %v20, 0
  %v33 = vsel %vm22, %v21, 0
  %35 = vmatprep.subr.mxu0 0.0
  %36 = vmatpush1.msra.mxu0 0.0
  %37 = vmatprep.subr.mxu0 0.0
  %38 = vmatpush1.msra.mxu0 0.0
  %39 = vmatprep.subr.mxu0 0.0
  %40 = vmatpush1.msra.mxu0 0.0
  %41 = vmatprep.subr.mxu0 0.0
  %42 = vmatpush1.msra.mxu0 0.0
  %43 = vmatprep.subr.mxu0 0.0
  %44 = vmatpush1.msra.mxu0 0.0
  %45 = vmatprep.subr.mxu0 0.0
  %46 = vmatpush1.msra.mxu0 0.0
  %47 = vmatprep.subr.mxu0 0.0
  %48 = vmatpush1.msra.mxu0 0.0
  %49 = vmatprep.subr.mxu0 0.0
  %50 = vmatpush1.msra.mxu0 0.0
  %51 = vmatprep.subr.mxu0 0.0
  %52 = vmatpush1.msra.mxu0 0.0
  %53 = vmatprep.subr.mxu0 0.0
  %54 = vmatpush1.msra.mxu0 0.0
  %55 = vmatprep.subr.mxu0 0.0
  %56 = vmatpush1.msra.mxu0 0.0
  %57 = vmatprep.subr.mxu0 0.0
  %58 = vmatpush1.msra.mxu0 0.0
  %59 = vmatprep.subr.mxu0 0.0
  %60 = vmatpush1.msra.mxu0 0.0
  %61 = vmatprep.subr.mxu0 0.0
  %62 = vmatpush1.msra.mxu0 0.0
  %63 = vmatprep.subr.mxu0 0.0
  %64 = vmatpush1.msra.mxu0 %v17
  %65 = vmatprep.subr.mxu0 0.0
  %66 = vmatpush1.msra.mxu0 %v16
  %67 = vmatprep.subr.mxu0 0.0
  %68 = vmatpush2.msra.mxu0 0.0
  %69 = vmatprep.subr.mxu0 0.0
  %70 = vmatpush2.msra.mxu0 0.0
  %71 = vmatprep.subr.mxu0 0.0
  %72 = vmatpush2.msra.mxu0 0.0
  %73 = vmatprep.subr.mxu0 0.0
  %74 = vmatpush2.msra.mxu0 0.0
  %75 = vmatprep.subr.mxu0 0.0
  %76 = vmatpush2.msra.mxu0 0.0
  %77 = vmatprep.subr.mxu0 0.0
  %78 = vmatpush2.msra.mxu0 0.0
  %79 = vmatprep.subr.mxu0 0.0
  %80 = vmatpush2.msra.mxu0 0.0
  %81 = vmatprep.subr.mxu0 0.0
  %82 = vmatpush2.msra.mxu0 0.0
  %83 = vmatprep.subr.mxu0 0.0
  %84 = vmatpush2.msra.mxu0 0.0
  %85 = vmatprep.subr.mxu0 0.0
  %86 = vmatpush2.msra.mxu0 0.0
  %87 = vmatprep.subr.mxu0 0.0
  %88 = vmatpush2.msra.mxu0 0.0
  %89 = vmatprep.subr.mxu0 0.0
  %90 = vmatpush2.msra.mxu0 0.0
  %91 = vmatprep.subr.mxu0 0.0
  %92 = vmatpush2.msra.mxu0 0.0
  %93 = vmatprep.subr.mxu0 0.0
  %94 = vmatpush2.msra.mxu0 0.0
  %95 = vmatprep.subr.mxu0 0.0
  %96 = vmatpush2.msra.mxu0 0.0
  %97 = vmatprep.subr.mxu0 0.0
  %98 = vmatpush2.msra.mxu0 0.0
  %99 = vmatprep.mubr.f32.mxu0 0.0
  %100 = vmatmul.mubr.f32.gmra.mxu0 %v24
  %v101 = vpop.f32.mrf.mxu0
  %v102 = vadd.f32 0.0, %v101
  %v103 = vpop.f32.mrf.mxu0
  %104 = vmatprep.mubr.f32.mxu0 0.0
  %105 = vmatmul.mubr.f32.gmra.mxu0 %v27
  %v106 = vpop.f32.mrf.mxu0
  %v107 = vadd.f32 0.0, %v106
  %v108 = vpop.f32.mrf.mxu0
  %109 = vmatprep.mubr.f32.mxu0 0.0
  %110 = vmatmul.mubr.f32.gmra.mxu0 %v30
  %v111 = vpop.f32.mrf.mxu0
  %v112 = vadd.f32 0.0, %v111
  %v113 = vpop.f32.mrf.mxu0
  %114 = vmatprep.mubr.f32.mxu0 0.0
  %115 = vmatmul.mubr.f32.gmra.mxu0 %v33
  %v116 = vpop.f32.mrf.mxu0
  %v117 = vadd.f32 0.0, %v116
  %v118 = vpop.f32.mrf.mxu0
  %119 = vdwg.mxu0
  %v120 = vmax.f32 %v102, 0.0
  %v121 = vmax.f32 %v107, 0.0
  %v122 = vmax.f32 %v112, 0.0
  %v123 = vmax.f32 %v117, 0.0
  %v124 = vld [vmem:[%s2] sm:$0xff]
  %v125 = vld [vmem:[%s2 + $0x8] sm:$0xff]
  %vm126 = vcmask 261120
  %v128 = vsel %vm126, %v124, 0
  %v131 = vsel %vm126, %v125, 0
  %133 = vmatprep.subr.mxu0 0.0
  %134 = vmatpush1.msra.mxu0 0.0
  %135 = vmatprep.subr.mxu0 0.0
  %136 = vmatpush1.msra.mxu0 0.0
  %137 = vmatprep.subr.mxu0 0.0
  %138 = vmatpush1.msra.mxu0 0.0
  %139 = vmatprep.subr.mxu0 0.0
  %140 = vmatpush1.msra.mxu0 0.0
  %141 = vmatprep.subr.mxu0 0.0
  %142 = vmatpush1.msra.mxu0 0.0
  %143 = vmatprep.subr.mxu0 0.0
  %144 = vmatpush1.msra.mxu0 0.0
  %145 = vmatprep.subr.mxu0 0.0
  %146 = vmatpush1.msra.mxu0 0.0
  %147 = vmatprep.subr.mxu0 0.0
  %148 = vmatpush1.msra.mxu0 0.0
  %149 = vmatprep.subr.mxu0 0.0
  %150 = vmatpush1.msra.mxu0 0.0
  %151 = vmatprep.subr.mxu0 0.0
  %152 = vmatpush1.msra.mxu0 0.0
  %153 = vmatprep.subr.mxu0 0.0
  %154 = vmatpush1.msra.mxu0 0.0
  %155 = vmatprep.subr.mxu0 0.0
  %156 = vmatpush1.msra.mxu0 0.0
  %157 = vmatprep.subr.mxu0 0.0
  %158 = vmatpush1.msra.mxu0 %v123
  %159 = vmatprep.subr.mxu0 0.0
  %160 = vmatpush1.msra.mxu0 %v122
  %161 = vmatprep.subr.mxu0 0.0
  %162 = vmatpush1.msra.mxu0 %v121
  %163 = vmatprep.subr.mxu0 0.0
  %164 = vmatpush1.msra.mxu0 %v120
  %165 = vmatprep.subr.mxu0 0.0
  %166 = vmatpush2.msra.mxu0 0.0
  %167 = vmatprep.subr.mxu0 0.0
  %168 = vmatpush2.msra.mxu0 0.0
  %169 = vmatprep.subr.mxu0 0.0
  %170 = vmatpush2.msra.mxu0 0.0
  %171 = vmatprep.subr.mxu0 0.0
  %172 = vmatpush2.msra.mxu0 0.0
  %173 = vmatprep.subr.mxu0 0.0
  %174 = vmatpush2.msra.mxu0 0.0
  %175 = vmatprep.subr.mxu0 0.0
  %176 = vmatpush2.msra.mxu0 0.0
  %177 = vmatprep.subr.mxu0 0.0
  %178 = vmatpush2.msra.mxu0 0.0
  %179 = vmatprep.subr.mxu0 0.0
  %180 = vmatpush2.msra.mxu0 0.0
  %181 = vmatprep.subr.mxu0 0.0
  %182 = vmatpush2.msra.mxu0 0.0
  %183 = vmatprep.subr.mxu0 0.0
  %184 = vmatpush2.msra.mxu0 0.0
  %185 = vmatprep.subr.mxu0 0.0
  %186 = vmatpush2.msra.mxu0 0.0
  %187 = vmatprep.subr.mxu0 0.0
  %188 = vmatpush2.msra.mxu0 0.0
  %189 = vmatprep.subr.mxu0 0.0
  %190 = vmatpush2.msra.mxu0 0.0
  %191 = vmatprep.subr.mxu0 0.0
  %192 = vmatpush2.msra.mxu0 0.0
  %193 = vmatprep.subr.mxu0 0.0
  %194 = vmatpush2.msra.mxu0 0.0
  %195 = vmatprep.subr.mxu0 0.0
  %196 = vmatpush2.msra.mxu0 0.0
  %197 = vmatprep.mubr.f32.mxu0 0.0
  %198 = vmatmul.mubr.f32.gmra.mxu0 %v128
  %v199 = vpop.f32.mrf.mxu0
  %v200 = vadd.f32 0.0, %v199
  %v201 = vpop.f32.mrf.mxu0
  %202 = vmatprep.mubr.f32.mxu0 0.0
  %203 = vmatmul.mubr.f32.gmra.mxu0 %v131
  %v204 = vpop.f32.mrf.mxu0
  %v205 = vadd.f32 0.0, %v204
  %v206 = vpop.f32.mrf.mxu0
  %207 = vdwg.mxu0
  %208 = vst [vmem:[%s3] sm:$0xff] %v200
  %209 = vst [vmem:[%s3 + $0x8] sm:$0xff] %v205
  // Predicated region
  $region14: #{decoder_forward.1} parent=0 // pred_check
    _
  $region15: #{decoder_forward.1} parent=0 // pred_check_branch
    %211 = sbr.rel (0) target = $region17
  $region16: #{decoder_forward.1} parent=0 // pred_region
    _
  $region17: #{decoder_forward.1} parent=0 // pred_fallthru
    _
  // Predicated region
  $region18: #{decoder_forward.1} parent=0 // pred_check
    _
  $region19: #{decoder_forward.1} parent=0 // pred_check_branch
    %213 = sbr.rel (0) target = $region21
  $region20: #{decoder_forward.1} parent=0 // pred_region
    _
  $region21: #{decoder_forward.1} parent=0 // pred_fallthru
    _

</llo_original>
